<compile_context>
chip_gen: v7x
topology: tpu7x:2x2x1
jax: 0.10.0
libtpu: 0.0.40
codegen_flags: <defaults>
</compile_context>

<pallas_src>
import functools

import jax
import jax.numpy as jnp
from jax.experimental import pallas as pl
from jax.experimental.pallas import tpu as pltpu

_LANE = 128


def _label_smoothing_kernel(col_ref, x_ref, t_ref, loss_ref,
                            m_sc, l_sc, wx_sc, *,
                            confidence, smoothing, num_classes, need_col_mask):
    j = pl.program_id(1)  # class-block index (innermost, "arbitrary")

    @pl.when(j == 0)
    def _init():
        m_sc[...] = jnp.full_like(m_sc, -jnp.inf)
        l_sc[...] = jnp.zeros_like(l_sc)
        wx_sc[...] = jnp.zeros_like(wx_sc)

    # TODO(synk): on v6e/v7x with bf16 inputs the elementwise max/sub/exp could
    # stay in bf16 (f32 accumulation only); v5e has no bf16 VPU/EUP, keep f32.
    x = x_ref[...].astype(jnp.float32)            # (TB, TC)
    col = col_ref[...]                            # (1, TC) int32, hoisted iota
    tgt = t_ref[...]                              # (TB, 1) int32

    if need_col_mask:
        valid = col < num_classes                 # (1, TC) — masks padded columns
        x_lse = jnp.where(valid, x, -jnp.inf)
    else:
        x_lse = x

    # Online log-sum-exp across class blocks (single pass when grid_c == 1).
    m_prev = m_sc[...]
    m_new = jnp.maximum(m_prev, jnp.max(x_lse, axis=-1, keepdims=True))
    l_sc[...] = (jnp.exp(m_prev - m_new) * l_sc[...]
                 + jnp.sum(jnp.exp(x_lse - m_new), axis=-1, keepdims=True))
    m_sc[...] = m_new

    # One coefficient-masked lane sum:
    #   sum(w * x)  with  w = smoothing/C + confidence * onehot(target)
    # equals confidence * x[target] + smoothing * mean(x).
    uni = smoothing / num_classes
    w = jnp.where(col == tgt, confidence + uni, uni)   # (TB, TC)
    wx = w * x
    if need_col_mask:
        wx = jnp.where(valid, wx, 0.0)
    wx_sc[...] += jnp.sum(wx, axis=-1, keepdims=True)

    @pl.when(j == pl.num_programs(1) - 1)
    def _finalize():
        # loss_row = logZ - conf*x[t] - smooth*mean(x)
        loss_ref[...] = m_sc[...] + jnp.log(l_sc[...]) - wx_sc[...]


def _round_up(v, m):
    return ((v + m - 1) // m) * m


def _choose_tiles(n, c, itemsize):
    """Pick (tile_b, tile_c) with a VMEM budget that includes kernel temps."""
    sub = max(8, 32 // itemsize)        # sublane granule: 8 (f32), 16 (bf16)
    # x block is double-buffered (2*itemsize) and the body materializes roughly
    # 4-5 (tile_b, tile_c) f32/i32/bool temporaries -> budget them explicitly.
    bytes_per_elem = 2 * itemsize + 5 * 4
    block_budget = 12 * 1024 * 1024     # headroom under the 40 MiB scoped limit

    tile_b_whole = block_budget // max(1, c * bytes_per_elem)
    if tile_b_whole >= 64:
        # Whole class axis in one block (common case): single pass, no masking.
        tile_c = c
        tile_b = min(1024, tile_b_whole)
    else:
        # Large-vocab regime: tile the class axis, keep batch tiles big.
        tile_b = min(256, _round_up(n, sub))
        tile_c = block_budget // max(1, tile_b * bytes_per_elem)
        tile_c = max(_LANE, (tile_c // _LANE) * _LANE)
        tile_c = min(tile_c, _round_up(c, _LANE))

    tile_b = min(tile_b, _round_up(n, sub))
    # Keep >= 2 batch blocks so the "parallel" axis can shard across v7x's 2 TCs.
    if n > sub:
        tile_b = min(tile_b, _round_up(pl.cdiv(n, 2), sub))
    tile_b = max(sub, (tile_b // sub) * sub)
    return tile_b, tile_c


def label_smoothing_loss(x, target, smoothing=0.1, *, tile_b=None, tile_c=None):
    """x: (N, C) float logits, target: (N,) int labels -> scalar loss."""
    n, c = x.shape
    confidence = 1.0 - smoothing
    itemsize = jnp.dtype(x.dtype).itemsize

    auto_b, auto_c = _choose_tiles(n, c, itemsize)
    tile_b = auto_b if tile_b is None else tile_b
    tile_c = auto_c if tile_c is None else tile_c

    grid_b = pl.cdiv(n, tile_b)
    grid_c = pl.cdiv(c, tile_c)
    c_pad = grid_c * tile_c
    need_col_mask = c_pad != c

    # Hoisted column indices (tiny).  Padded entries are >= C, so the kernel's
    # `col < C` mask excludes them and they can never equal a valid target.
    # The big (N, C) tensor itself is never padded or copied.
    col = jnp.arange(c_pad, dtype=jnp.int32).reshape(1, c_pad)
    target2d = target.astype(jnp.int32).reshape(n, 1)

    kernel = functools.partial(
        _label_smoothing_kernel,
        confidence=float(confidence), smoothing=float(smoothing),
        num_classes=c, need_col_mask=need_col_mask)

    cost = pl.CostEstimate(
        flops=6 * n * c,
        transcendentals=n * c,
        bytes_accessed=n * c * itemsize + 8 * n + 4 * c_pad + 4 * n)

    per_row = pl.pallas_call(
        kernel,
        out_shape=jax.ShapeDtypeStruct((n, 1), jnp.float32),
        grid_spec=pltpu.PrefetchScalarGridSpec(
            num_scalar_prefetch=0,
            grid=(grid_b, grid_c),
            in_specs=[
                pl.BlockSpec((1, tile_c), lambda i, j: (0, j)),       # col idx
                pl.BlockSpec((tile_b, tile_c), lambda i, j: (i, j)),  # logits
                pl.BlockSpec((tile_b, 1), lambda i, j: (i, 0)),       # targets
            ],
            out_specs=pl.BlockSpec((tile_b, 1), lambda i, j: (i, 0)),
            scratch_shapes=[pltpu.VMEM((tile_b, 1), jnp.float32)] * 3,
        ),
        compiler_params=pltpu.CompilerParams(
            dimension_semantics=("parallel", "arbitrary"),
            vmem_limit_bytes=40 * 1024 * 1024),
        cost_estimate=cost,
    )(col, x, target2d)

    # Tiny final reduction (N floats) in the wrapper.
    return jnp.mean(per_row)


def _reference(x, target, smoothing):
    logprobs = jax.nn.log_softmax(x.astype(jnp.float32), axis=-1)
    nll = -jnp.take_along_axis(logprobs, target[:, None], axis=-1)[:, 0]
    smooth = -jnp.mean(logprobs, axis=-1)
    return jnp.mean((1.0 - smoothing) * nll + smoothing * smooth)


if __name__ == "__main__":
    key = jax.random.PRNGKey(0)

    # --- Test 1: common path (whole class axis, no padding, auto tiles) ------
    k1, k2, k3, k4 = jax.random.split(key, 4)
    n1, c1, sm1 = 16, 128, 0.1
    x1 = jax.random.normal(k1, (n1, c1), dtype=jnp.float32)
    t1 = jax.random.randint(k2, (n1,), 0, c1, dtype=jnp.int32)
    loss1 = jax.block_until_ready(label_smoothing_loss(x1, t1, sm1))
    ref1 = _reference(x1, t1, sm1)
    assert jnp.allclose(loss1, ref1, atol=1e-5, rtol=1e-5), (loss1, ref1)

    # --- Test 2: class-tiled online-LSE path (partial batch + class blocks) --
    n2, c2, sm2 = 20, 320, 0.2
    x2 = jax.random.normal(k3, (n2, c2), dtype=jnp.float32)
    t2 = jax.random.randint(k4, (n2,), 0, c2, dtype=jnp.int32)
    loss2 = jax.block_until_ready(
        label_smoothing_loss(x2, t2, sm2, tile_b=8, tile_c=128))
    ref2 = _reference(x2, t2, sm2)
    assert jnp.allclose(loss2, ref2, atol=1e-5, rtol=1e-5), (loss2, ref2)

    print("KERNEL_OK")
</pallas_src>

<mosaic_0001>
module attributes {stable_mosaic.version = 11 : i64} {
  func.func @_label_smoothing_kernel(%arg0: i32, %arg1: i32, %arg2: memref<1x128xi32, #tpu.memory_space<vmem>>, %arg3: memref<8x128xf32, #tpu.memory_space<vmem>>, %arg4: memref<8x1xi32, #tpu.memory_space<vmem>>, %arg5: memref<8x1xf32, #tpu.memory_space<vmem>>, %arg6: memref<8x1xf32, #tpu.memory_space<vmem>>, %arg7: memref<8x1xf32, #tpu.memory_space<vmem>>, %arg8: memref<8x1xf32, #tpu.memory_space<vmem>>) attributes {dimension_semantics = [#tpu.dimension_semantics<parallel>, #tpu.dimension_semantics<arbitrary>], iteration_bounds = array<i64: 2, 1>, scalar_prefetch = 0 : i64, scratch_operands = 3 : i64, tpu.core_type = #tpu.core_type<tc>, window_params = [{transform_indices = @transform_0, window_bounds = array<i64: 1, 128>}, {transform_indices = @transform_1, window_bounds = array<i64: 8, 128>}, {transform_indices = @transform_2, window_bounds = array<i64: 8, 1>}, {transform_indices = @transform_3, window_bounds = array<i64: 8, 1>}]} {
    %c0_i32 = arith.constant 0 : i32
    %0 = arith.cmpi eq, %arg1, %c0_i32 : i32
    %1 = arith.extui %0 : i1 to i32
    %c0_i32_0 = arith.constant 0 : i32
    %2 = arith.cmpi ne, %1, %c0_i32_0 : i32
    scf.if %2 {
      %cst_24 = arith.constant 0xFF800000 : f32
      %37 = vector.broadcast %cst_24 : f32 to vector<8x1xf32>
      %c0_25 = arith.constant 0 : index
      %c0_26 = arith.constant 0 : index
      %38 = vector.load %arg6[%c0_25, %c0_26] : memref<8x1xf32, #tpu.memory_space<vmem>>, vector<8x1xf32>
      tpu.vector_store %arg6[%c0_25, %c0_26], %37 {strides = array<i32>} : memref<8x1xf32, #tpu.memory_space<vmem>>, vector<8x1xf32>,
      %cst_27 = arith.constant 0.000000e+00 : f32
      %39 = vector.broadcast %cst_27 : f32 to vector<8x1xf32>
      %c0_28 = arith.constant 0 : index
      %c0_29 = arith.constant 0 : index
      %40 = vector.load %arg7[%c0_28, %c0_29] : memref<8x1xf32, #tpu.memory_space<vmem>>, vector<8x1xf32>
      tpu.vector_store %arg7[%c0_28, %c0_29], %39 {strides = array<i32>} : memref<8x1xf32, #tpu.memory_space<vmem>>, vector<8x1xf32>,
      %cst_30 = arith.constant 0.000000e+00 : f32
      %41 = vector.broadcast %cst_30 : f32 to vector<8x1xf32>
      %c0_31 = arith.constant 0 : index
      %c0_32 = arith.constant 0 : index
      %42 = vector.load %arg8[%c0_31, %c0_32] : memref<8x1xf32, #tpu.memory_space<vmem>>, vector<8x1xf32>
      tpu.vector_store %arg8[%c0_31, %c0_32], %41 {strides = array<i32>} : memref<8x1xf32, #tpu.memory_space<vmem>>, vector<8x1xf32>,
    } else {
    }
    %c0 = arith.constant 0 : index
    %c0_1 = arith.constant 0 : index
    %3 = vector.load %arg3[%c0, %c0_1] : memref<8x128xf32, #tpu.memory_space<vmem>>, vector<8x128xf32>
    %c0_2 = arith.constant 0 : index
    %c0_3 = arith.constant 0 : index
    %4 = vector.load %arg2[%c0_2, %c0_3] : memref<1x128xi32, #tpu.memory_space<vmem>>, vector<1x128xi32>
    %c0_4 = arith.constant 0 : index
    %c0_5 = arith.constant 0 : index
    %5 = vector.load %arg4[%c0_4, %c0_5] : memref<8x1xi32, #tpu.memory_space<vmem>>, vector<8x1xi32>
    %c0_6 = arith.constant 0 : index
    %c0_7 = arith.constant 0 : index
    %6 = vector.load %arg6[%c0_6, %c0_7] : memref<8x1xf32, #tpu.memory_space<vmem>>, vector<8x1xf32>
    %cst = arith.constant dense<0xFF800000> : vector<8xf32>
    %7 = vector.multi_reduction <maximumf>, %3, %cst [1] : vector<8x128xf32> to vector<8xf32>
    %8 = vector.shape_cast %7 : vector<8xf32> to vector<8x1xf32>
    %9 = arith.maximumf %6, %8 : vector<8x1xf32>
    %10 = arith.subf %6, %9 : vector<8x1xf32>
    %11 = math.exp %10 : vector<8x1xf32>
    %c0_8 = arith.constant 0 : index
    %c0_9 = arith.constant 0 : index
    %12 = vector.load %arg7[%c0_8, %c0_9] : memref<8x1xf32, #tpu.memory_space<vmem>>, vector<8x1xf32>
    %13 = arith.mulf %11, %12 : vector<8x1xf32>
    %14 = vector.broadcast %9 : vector<8x1xf32> to vector<8x128xf32>
    %15 = arith.subf %3, %14 : vector<8x128xf32>
    %16 = math.exp %15 : vector<8x128xf32>
    %cst_10 = arith.constant dense<0.000000e+00> : vector<8xf32>
    %17 = vector.multi_reduction <add>, %16, %cst_10 [1] : vector<8x128xf32> to vector<8xf32>
    %18 = vector.shape_cast %17 : vector<8xf32> to vector<8x1xf32>
    %19 = arith.addf %13, %18 : vector<8x1xf32>
    %c0_11 = arith.constant 0 : index
    %c0_12 = arith.constant 0 : index
    %20 = vector.load %arg7[%c0_11, %c0_12] : memref<8x1xf32, #tpu.memory_space<vmem>>, vector<8x1xf32>
    tpu.vector_store %arg7[%c0_11, %c0_12], %19 {strides = array<i32>} : memref<8x1xf32, #tpu.memory_space<vmem>>, vector<8x1xf32>,
    %c0_13 = arith.constant 0 : index
    %c0_14 = arith.constant 0 : index
    %21 = vector.load %arg6[%c0_13, %c0_14] : memref<8x1xf32, #tpu.memory_space<vmem>>, vector<8x1xf32>
    tpu.vector_store %arg6[%c0_13, %c0_14], %9 {strides = array<i32>} : memref<8x1xf32, #tpu.memory_space<vmem>>, vector<8x1xf32>,
    %22 = vector.broadcast %4 : vector<1x128xi32> to vector<8x128xi32>
    %23 = vector.broadcast %5 : vector<8x1xi32> to vector<8x128xi32>
    %24 = arith.cmpi eq, %22, %23 : vector<8x128xi32>
    %cst_15 = arith.constant 0.900781273 : f32
    %cst_16 = arith.constant 7.812500e-04 : f32
    %25 = vector.broadcast %cst_15 : f32 to vector<8x128xf32>
    %26 = vector.broadcast %cst_16 : f32 to vector<8x128xf32>
    %27 = arith.select %24, %25, %26 : vector<8x128xi1>, vector<8x128xf32>
    %28 = arith.mulf %27, %3 : vector<8x128xf32>
    %c0_17 = arith.constant 0 : index
    %c0_18 = arith.constant 0 : index
    %29 = vector.load %arg8[%c0_17, %c0_18] : memref<8x1xf32, #tpu.memory_space<vmem>>, vector<8x1xf32>
    %cst_19 = arith.constant dense<0.000000e+00> : vector<8xf32>
    %30 = vector.multi_reduction <add>, %28, %cst_19 [1] : vector<8x128xf32> to vector<8xf32>
    %31 = vector.shape_cast %30 : vector<8xf32> to vector<8x1xf32>
    %32 = arith.addf %29, %31 : vector<8x1xf32>
    %c0_20 = arith.constant 0 : index
    %c0_21 = arith.constant 0 : index
    %33 = vector.load %arg8[%c0_20, %c0_21] : memref<8x1xf32, #tpu.memory_space<vmem>>, vector<8x1xf32>
    tpu.vector_store %arg8[%c0_20, %c0_21], %32 {strides = array<i32>} : memref<8x1xf32, #tpu.memory_space<vmem>>, vector<8x1xf32>,
    %c0_i32_22 = arith.constant 0 : i32
    %34 = arith.cmpi eq, %arg1, %c0_i32_22 : i32
    %35 = arith.extui %34 : i1 to i32
    %c0_i32_23 = arith.constant 0 : i32
    %36 = arith.cmpi ne, %35, %c0_i32_23 : i32
    scf.if %36 {
      %c0_24 = arith.constant 0 : index
      %c0_25 = arith.constant 0 : index
      %37 = vector.load %arg6[%c0_24, %c0_25] : memref<8x1xf32, #tpu.memory_space<vmem>>, vector<8x1xf32>
      %c0_26 = arith.constant 0 : index
      %c0_27 = arith.constant 0 : index
      %38 = vector.load %arg7[%c0_26, %c0_27] : memref<8x1xf32, #tpu.memory_space<vmem>>, vector<8x1xf32>
      %39 = math.log %38 : vector<8x1xf32>
      %40 = arith.addf %37, %39 : vector<8x1xf32>
      %c0_28 = arith.constant 0 : index
      %c0_29 = arith.constant 0 : index
      %41 = vector.load %arg8[%c0_28, %c0_29] : memref<8x1xf32, #tpu.memory_space<vmem>>, vector<8x1xf32>
      %42 = arith.subf %40, %41 : vector<8x1xf32>
      %c0_30 = arith.constant 0 : index
      %c0_31 = arith.constant 0 : index
      %43 = vector.load %arg5[%c0_30, %c0_31] : memref<8x1xf32, #tpu.memory_space<vmem>>, vector<8x1xf32>
      tpu.vector_store %arg5[%c0_30, %c0_31], %42 {strides = array<i32>} : memref<8x1xf32, #tpu.memory_space<vmem>>, vector<8x1xf32>,
    } else {
    }
    return
  }
  func.func @transform_0(%arg0: i32, %arg1: i32) -> (i32, i32) {
    %c0_i32 = arith.constant 0 : i32
    %c0_i32_0 = arith.constant 0 : i32
    return %c0_i32, %arg1 : i32, i32
  }
  func.func @transform_1(%arg0: i32, %arg1: i32) -> (i32, i32) {
    %c0_i32 = arith.constant 0 : i32
    return %arg0, %arg1 : i32, i32
  }
  func.func @transform_2(%arg0: i32, %arg1: i32) -> (i32, i32) {
    %c0_i32 = arith.constant 0 : i32
    %c0_i32_0 = arith.constant 0 : i32
    return %arg0, %c0_i32 : i32, i32
  }
  func.func @transform_3(%arg0: i32, %arg1: i32) -> (i32, i32) {
    %c0_i32 = arith.constant 0 : i32
    %c0_i32_0 = arith.constant 0 : i32
    return %arg0, %c0_i32 : i32, i32
  }
}

</mosaic_0001>

<llo_original>
// kernel: tpu_custom_call.1
$region0: #{tpu_custom_call.1}
  #allocation0 [shape = 'u32[]', space=smem, size = 0x4, offset = 0x4, fixed_abs, tag = 'smem constant byte address 0x4 - core index']
  #allocation1 [shape = 'u32[144,128]{1,0:T(1,128)}', space=vmem, size = 0x12000, scoped, tag = 'internal scratch']
  #allocation2 [shape = 'f32[8,1]{1,0:T(8,128)}', space=vmem, size = 0x1000, scoped, tag = 'scratch operand']
  #allocation3 [shape = 'f32[8,1]{1,0:T(8,128)}', space=vmem, size = 0x1000, scoped, tag = 'scratch operand']
  #allocation4 [shape = 'f32[8,1]{1,0:T(8,128)}', space=vmem, size = 0x1000, scoped, tag = 'scratch operand']
  %s0 = inlined_call_operand.vmem [shape: s32[1,128], index: 0, kind: input, shape index: {}]
  %s1 = inlined_call_operand.vmem [shape: f32[16,128], index: 1, kind: input, shape index: {}]
  %s2 = inlined_call_operand.vmem [shape: s32[16,1], index: 2, kind: input, shape index: {}]
  %s3 = inlined_call_operand.vmem [shape: f32[16,1], index: 3, kind: output, shape index: {}]
  %s4 = sld [smem:[#allocation0]]
  $region53: #{tpu_custom_call.1} parent=0
    _
  %s6 = ssub.s32 1, %s4
  %s7 = scalar_select 0, %s6, %s4
  loop: start=0, step=1, limit=4
  $region2: #{tpu_custom_call.1} parent=0 // loop_pre_header
    _
  $region3: #{tpu_custom_call.1} parent=0 // loop_header
    %s9 = sphi 0, %s13
    %p10 = scmp.ge.s32.totalorder %s9, 4
    %s16 = sphi 0, %s28
    %s17 = sphi 0, %s24
    %s18 = sphi 0, %s16
    %s19 = sphi 0, %s17
    %s20 = sphi 0, %s18
    %s21 = sphi 0, %s19
    %s31 = sphi 0, %s33
    %s34 = sphi 0, %s31
    %s35 = sphi 0, %s34
    %s51 = sphi 0, %s35
    %s59 = sphi 0, %s61
    %s62 = sphi 0, %s59
    %s63 = sphi 0, %s62
    %s79 = sphi 0, %s63
    %s85 = sphi 0, %s87
    %s88 = sphi 0, %s85
    %s89 = sphi 0, %s88
    %s105 = sphi 0, %s89
    %s111 = sphi 0, %s113
    %s114 = sphi 0, %s111
    %s115 = sphi 0, %s114
    %s131 = sphi 0, %s115
  $region4: #{tpu_custom_call.1} parent=0 // loop_header_branch
    %12 = sbr.rel (%p10) target = $region8
  $region5: #{tpu_custom_call.1} parent=0 // loop_body
    %s14 = ssub.s32 %s9, 1
    %s15 = ssub.s32 %s9, 2
    %s22 = sadd.s32 1, %s17
    %p23 = scmp.ge.s32.totalorder %s22, 1
    %s24 = scalar_select %p23, 0, %s22
    %s25 = sadd.s32 1, %s16
    %s26 = scalar_select %p23, %s25, %s16
    %p27 = scmp.ge.s32.totalorder %s26, 2
    %s28 = scalar_select %p27, 0, %s26
    %s29 = ssub.s32 %s17, %s24
    %p30 = scmp.eq.s32.totalorder %s29, 0
    %s32 = sadd.s32 %s31, 1
    %s33 = scalar_select %p30, %s31, %s32
    %p36 = pneg %p30
    %p37 = scmp.eq.s32.totalorder %s9, 1
    %p38 = por %p36, %p37
    %p39 = scmp.ne.s32.totalorder %s31, %s34
    %p40 = scmp.eq.s32.totalorder %s9, 0
    %p41 = por %p39, %p40
    %p42 = scmp.ne.s32.totalorder %s31, %s34
    %p43 = scmp.eq.s32.totalorder %s14, 1
    %p44 = por %p42, %p43
    %p45 = scmp.ne.s32.totalorder %s34, %s35
    %p46 = scmp.eq.s32.totalorder %s14, 0
    %p47 = por %p45, %p46
    %p48 = scmp.ne.s32.totalorder %s34, %s35
    %p49 = scmp.eq.s32.totalorder %s15, 1
    %p50 = por %p48, %p49
    %p52 = scmp.ne.s32.totalorder %s35, %s51
    %p53 = scmp.eq.s32.totalorder %s15, 0
    %p54 = por %p52, %p53
    %s55 = ssub.s32 %s16, %s28
    %s56 = ssub.s32 %s17, %s24
    %s57 = sor.u32 %s55, %s56
    %p58 = scmp.eq.s32.totalorder %s57, 0
    %s60 = sadd.s32 %s59, 1
    %s61 = scalar_select %p58, %s59, %s60
    %p64 = pneg %p58
    %p65 = scmp.eq.s32.totalorder %s9, 1
    %p66 = por %p64, %p65
    %p67 = scmp.ne.s32.totalorder %s59, %s62
    %p68 = scmp.eq.s32.totalorder %s9, 0
    %p69 = por %p67, %p68
    %p70 = scmp.ne.s32.totalorder %s59, %s62
    %p71 = scmp.eq.s32.totalorder %s14, 1
    %p72 = por %p70, %p71
    %p73 = scmp.ne.s32.totalorder %s62, %s63
    %p74 = scmp.eq.s32.totalorder %s14, 0
    %p75 = por %p73, %p74
    %p76 = scmp.ne.s32.totalorder %s62, %s63
    %p77 = scmp.eq.s32.totalorder %s15, 1
    %p78 = por %p76, %p77
    %p80 = scmp.ne.s32.totalorder %s63, %s79
    %p81 = scmp.eq.s32.totalorder %s15, 0
    %p82 = por %p80, %p81
    %s83 = ssub.s32 %s16, %s28
    %p84 = scmp.eq.s32.totalorder %s83, 0
    %s86 = sadd.s32 %s85, 1
    %s87 = scalar_select %p84, %s85, %s86
    %p90 = pneg %p84
    %p91 = scmp.eq.s32.totalorder %s9, 1
    %p92 = por %p90, %p91
    %p93 = scmp.ne.s32.totalorder %s85, %s88
    %p94 = scmp.eq.s32.totalorder %s9, 0
    %p95 = por %p93, %p94
    %p96 = scmp.ne.s32.totalorder %s85, %s88
    %p97 = scmp.eq.s32.totalorder %s14, 1
    %p98 = por %p96, %p97
    %p99 = scmp.ne.s32.totalorder %s88, %s89
    %p100 = scmp.eq.s32.totalorder %s14, 0
    %p101 = por %p99, %p100
    %p102 = scmp.ne.s32.totalorder %s88, %s89
    %p103 = scmp.eq.s32.totalorder %s15, 1
    %p104 = por %p102, %p103
    %p106 = scmp.ne.s32.totalorder %s89, %s105
    %p107 = scmp.eq.s32.totalorder %s15, 0
    %p108 = por %p106, %p107
    %s109 = ssub.s32 %s16, %s28
    %p110 = scmp.eq.s32.totalorder %s109, 0
    %s112 = sadd.s32 %s111, 1
    %s113 = scalar_select %p110, %s111, %s112
    %p116 = pneg %p110
    %p117 = scmp.eq.s32.totalorder %s9, 1
    %p118 = por %p116, %p117
    %p119 = scmp.ne.s32.totalorder %s111, %s114
    %p120 = scmp.eq.s32.totalorder %s9, 0
    %p121 = por %p119, %p120
    %p122 = scmp.ne.s32.totalorder %s111, %s114
    %p123 = scmp.eq.s32.totalorder %s14, 1
    %p124 = por %p122, %p123
    %p125 = scmp.ne.s32.totalorder %s114, %s115
    %p126 = scmp.eq.s32.totalorder %s14, 0
    %p127 = por %p125, %p126
    %p128 = scmp.ne.s32.totalorder %s114, %s115
    %p129 = scmp.eq.s32.totalorder %s15, 1
    %p130 = por %p128, %p129
    %p132 = scmp.ne.s32.totalorder %s115, %s131
    %p133 = scmp.eq.s32.totalorder %s15, 0
    %p134 = por %p132, %p133
    %p135 = scmp.le.s32.totalorder 1, %s9
    %p136 = scmp.lt.s32.totalorder %s9, 3
    %p137 = pnand %p135, %p136
    %p138 = pneg %p137
    // Predicated region
    $region9: #{tpu_custom_call.1} parent=5 // pred_check
      _
    $region10: #{tpu_custom_call.1} parent=5 // pred_check_branch
      %140 = sbr.rel (%p137) target = $region12
    $region11: #{tpu_custom_call.1} parent=5 // pred_region
      %s141 = ssub.s32 %s9, 1
      // Predicated region
      $region13: #{tpu_custom_call.1} parent=11 // pred_check
        %p142 = pneg %p47
      $region14: #{tpu_custom_call.1} parent=11 // pred_check_branch
        %144 = sbr.rel (%p142) target = $region16
      $region15: #{tpu_custom_call.1} parent=11 // pred_region
        %p145 = scmp.lt.s32.totalorder %s19, 0
        %s146 = scalar_select %p145, %s19, 0
        %s147 = scalar_lea.vmem %s0, %s146
      $region16: #{tpu_custom_call.1} parent=11 // pred_fallthru
        _
    $region12: #{tpu_custom_call.1} parent=5 // pred_fallthru
      _
    %p148 = scmp.lt.s32.totalorder %s9, 2
    // Predicated region
    $region17: #{tpu_custom_call.1} parent=5 // pred_check
      %p149 = pneg %p148
    $region18: #{tpu_custom_call.1} parent=5 // pred_check_branch
      %151 = sbr.rel (%p149) target = $region20
    $region19: #{tpu_custom_call.1} parent=5 // pred_region
      // Predicated region
      $region21: #{tpu_custom_call.1} parent=19 // pred_check
        %p152 = pneg %p69
      $region22: #{tpu_custom_call.1} parent=19 // pred_check_branch
        %154 = sbr.rel (%p152) target = $region24
      $region23: #{tpu_custom_call.1} parent=19 // pred_region
        %p155 = scmp.lt.s32.totalorder %s16, 1
        %s156 = scalar_select %p155, %s16, 1
        %p157 = scmp.lt.s32.totalorder %s17, 0
        %s158 = scalar_select %p157, %s17, 0
        %s159 = sadd.s32 %s158, %s156
        %s160 = smul.addr %s159, 8
        %s161 = scalar_lea.vmem %s1, %s160
      $region24: #{tpu_custom_call.1} parent=19 // pred_fallthru
        _
      // Predicated region
      $region25: #{tpu_custom_call.1} parent=19 // pred_check
        %p162 = pneg %p95
      $region26: #{tpu_custom_call.1} parent=19 // pred_check_branch
        %164 = sbr.rel (%p162) target = $region28
      $region27: #{tpu_custom_call.1} parent=19 // pred_region
        %p165 = scmp.lt.s32.totalorder %s16, 1
        %s166 = scalar_select %p165, %s16, 1
        %s167 = smul.addr %s166, 8
        %s168 = scalar_lea.vmem %s2, %s167
      $region28: #{tpu_custom_call.1} parent=19 // pred_fallthru
        _
    $region20: #{tpu_custom_call.1} parent=5 // pred_fallthru
      _
    %p169 = scmp.le.s32.totalorder 1, %s9
    %p170 = scmp.lt.s32.totalorder %s9, 3
    %p171 = pnand %p169, %p170
    %p172 = pneg %p171
    // Predicated region
    $region29: #{tpu_custom_call.1} parent=5 // pred_check
      _
    $region30: #{tpu_custom_call.1} parent=5 // pred_check_branch
      %174 = sbr.rel (%p171) target = $region32
    $region31: #{tpu_custom_call.1} parent=5 // pred_region
      %s175 = ssub.s32 %s9, 1
      %p176 = scmp.lt.s32.totalorder %s19, 0
      %s177 = scalar_select %p176, %s19, 0
      %s178 = scalar_lea.vmem %s0, %s177
      %p179 = pneg %p47
      %p180 = pneg %p44
      %p181 = scmp.lt.s32.totalorder %s18, 1
      %s182 = scalar_select %p181, %s18, 1
      %p183 = scmp.lt.s32.totalorder %s19, 0
      %s184 = scalar_select %p183, %s19, 0
      %s185 = sadd.s32 %s184, %s182
      %s186 = smul.addr %s185, 8
      %s187 = scalar_lea.vmem %s1, %s186
      %p188 = pneg %p75
      %p189 = pneg %p72
      %p190 = scmp.lt.s32.totalorder %s18, 1
      %s191 = scalar_select %p190, %s18, 1
      %s192 = smul.addr %s191, 8
      %s193 = scalar_lea.vmem %s2, %s192
      %p194 = pneg %p101
      %p195 = pneg %p98
      %p196 = pneg %p127
      %p197 = pneg %p124
      %p198 = scmp.lt.s32.totalorder %s18, 1
      %s199 = scalar_select %p198, %s18, 1
      %s200 = smul.addr %s199, 8
      %s201 = scalar_lea.vmem %s3, %s200
      %p202 = scmp.lt.s32.totalorder %s19, 0
      %s203 = scalar_select %p202, %s19, 0
      %s204 = scalar_lea.vmem %s0, %s203
      %p205 = scmp.lt.s32.totalorder %s18, 1
      %s206 = scalar_select %p205, %s18, 1
      %p207 = scmp.lt.s32.totalorder %s19, 0
      %s208 = scalar_select %p207, %s19, 0
      %s209 = sadd.s32 %s208, %s206
      %s210 = smul.addr %s209, 8
      %s211 = scalar_lea.vmem %s1, %s210
      %p212 = scmp.lt.s32.totalorder %s18, 1
      %s213 = scalar_select %p212, %s18, 1
      %s214 = smul.addr %s213, 8
      %s215 = scalar_lea.vmem %s2, %s214
      %p216 = scmp.lt.s32.totalorder %s18, 1
      %s217 = scalar_select %p216, %s18, 1
      %s218 = smul.addr %s217, 8
      %s219 = scalar_lea.vmem %s3, %s218
      %p220 = scmp.eq.s32.totalorder %s19, 0
      // Predicated region
      $region33: #{tpu_custom_call.1} parent=31 // pred_check
        %p221 = pneg %p220
      $region34: #{tpu_custom_call.1} parent=31 // pred_check_branch
        %223 = sbr.rel (%p221) target = $region36
      $region35: #{tpu_custom_call.1} parent=31 // pred_region
        %vm224 = vcmask 7168
        %225 = vst.msk [vmem:[#allocation2] sm:$0xff] %vm224, -inf
        %226 = vst.msk [vmem:[#allocation3] sm:$0xff] %vm224, 0.0
        %227 = vst.msk [vmem:[#allocation4] sm:$0xff] %vm224, 0.0
      $region36: #{tpu_custom_call.1} parent=31 // pred_fallthru
        _
      %v228 = vld [vmem:[%s211] sm:$0xff]
      %v229 = vld [vmem:[%s204] sm:$0x1]
      %v230 = vld [vmem:[%s215] sm:$0xff]
      %v231 = vld [vmem:[#allocation2] sm:$0xff]
      %232 = vmax.xlane.f32.xlu0 %v228
      %v233 = vpop.xlane.xlu0 %232
      %v234 = vmax.f32 %v231, %v233
      %v235 = vsub.f32 %v231, %v234
      %v236 = vmul.f32 %v235, 1.442695
      %v237 = vpow.pop %v236
      %v238 = vld [vmem:[#allocation3] sm:$0xff]
      %v239 = vmul.f32 %v237, %v238
      %241 = vset.pattern.permute.xlu0 0
      %242 = vperm.xlu0 %241, %v234
      %v243 = vpop.permute.xlu0 %242
      %v245 = vsub.f32 %v228, %v243
      %v246 = vmul.f32 %v245, 1.442695
      %v247 = vpow.pop %v246
      %248 = vadd.xlane.f32.xlu0 %v247
      %v249 = vpop.xlane.xlu0 %248
      %v250 = vadd.f32 %v239, %v249
      %vm251 = vcmask 7168
      %252 = vst.msk [vmem:[#allocation3] sm:$0xff] %vm251, %v250
      %253 = vst.msk [vmem:[#allocation2] sm:$0xff] %vm251, %v234
      %v254 = vlaneseq
      %v255 = vshrl.u32 %v254, 7
      %v256 = vsub.s32 0, %v255
      %v257 = vrot.slane %v229, %v256
      %258 = vset.pattern.permute.xlu0 0
      %259 = vperm.xlu0 %258, %v230
      %v260 = vpop.permute.xlu0 %259
      %vm261 = vcmp.eq.s32.totalorder %v257, %v260
      %v262 = vsel %vm261, 0.9007813, 0.00078125
      %v263 = vmul.f32 %v262, %v228
      %v264 = vld [vmem:[#allocation4] sm:$0xff]
      %265 = vadd.xlane.f32.xlu0 %v263
      %v266 = vpop.xlane.xlu0 %265
      %v267 = vadd.f32 %v264, %v266
      %268 = vst.msk [vmem:[#allocation4] sm:$0xff] %vm251, %v267
      // Predicated region
      $region37: #{tpu_custom_call.1} parent=31 // pred_check
        %p269 = pneg %p220
      $region38: #{tpu_custom_call.1} parent=31 // pred_check_branch
        %271 = sbr.rel (%p269) target = $region40
      $region39: #{tpu_custom_call.1} parent=31 // pred_region
        %v272 = vld [vmem:[#allocation2] sm:$0xff]
        %v273 = vld [vmem:[#allocation3] sm:$0xff]
        %v274 = vlog2.pop %v273
        %v275 = vmul.f32 %v274, 0.6931472
        %v276 = vadd.f32 %v272, %v275
        %v277 = vld [vmem:[#allocation4] sm:$0xff]
        %v278 = vsub.f32 %v276, %v277
        %279 = vst.msk [vmem:[%s219] sm:$0xff] %vm251, %v278
      $region40: #{tpu_custom_call.1} parent=31 // pred_fallthru
        _
      %p280 = scmp.lt.s32.totalorder %s18, 1
      %s281 = scalar_select %p280, %s18, 1
      %s282 = smul.addr %s281, 8
      %s283 = scalar_lea.vmem %s3, %s282
      // Predicated region
      $region41: #{tpu_custom_call.1} parent=31 // pred_check
        %p284 = pneg %p124
      $region42: #{tpu_custom_call.1} parent=31 // pred_check_branch
        %286 = sbr.rel (%p284) target = $region44
      $region43: #{tpu_custom_call.1} parent=31 // pred_region
        _
      $region44: #{tpu_custom_call.1} parent=31 // pred_fallthru
        _
    $region32: #{tpu_custom_call.1} parent=5 // pred_fallthru
      _
    %p287 = scmp.le.s32.totalorder 2, %s9
    // Predicated region
    $region45: #{tpu_custom_call.1} parent=5 // pred_check
      %p288 = pneg %p287
    $region46: #{tpu_custom_call.1} parent=5 // pred_check_branch
      %290 = sbr.rel (%p288) target = $region48
    $region47: #{tpu_custom_call.1} parent=5 // pred_region
      %s291 = ssub.s32 %s9, 2
      // Predicated region
      $region49: #{tpu_custom_call.1} parent=47 // pred_check
        %p292 = pneg %p130
      $region50: #{tpu_custom_call.1} parent=47 // pred_check_branch
        %294 = sbr.rel (%p292) target = $region52
      $region51: #{tpu_custom_call.1} parent=47 // pred_region
        %p295 = scmp.lt.s32.totalorder %s20, 1
        %s296 = scalar_select %p295, %s20, 1
        %s297 = smul.addr %s296, 8
        %s298 = scalar_lea.vmem %s3, %s297
      $region52: #{tpu_custom_call.1} parent=47 // pred_fallthru
        _
    $region48: #{tpu_custom_call.1} parent=5 // pred_fallthru
      _
  $region6: #{tpu_custom_call.1} parent=0 // loop_footer
    %s13 = sadd.s32 1, %s9
  $region7: #{tpu_custom_call.1} parent=0 // loop_footer_branch
    %8 = sbr.rel target = $region3
  $region8: #{tpu_custom_call.1} parent=0 // loop_exit
    _

</llo_original>
